<compile_context>
chip_gen: v5e
topology: v5e:2x2
jax: 0.10.0
libtpu: 0.0.40
codegen_flags: <defaults>
</compile_context>

<pallas_src>
import math

import jax
import jax.numpy as jnp
from jax.experimental import pallas as pl
from jax.experimental.pallas import tpu as pltpu


def _round_up(a, b):
    return ((a + b - 1) // b) * b


def _cdiv(a, b):
    return (a + b - 1) // b


def _gelu_tanh(x):
    # 0.5 * x * (1 + tanh(sqrt(2/pi) * (x + 0.044715 * x**3)))  (module's GELU)
    c = jnp.float32(math.sqrt(2.0 / math.pi))
    return 0.5 * x * (1.0 + jnp.tanh(c * (x + 0.044715 * (x * x * x))))


def _ffn_kernel(x_ref, w1_ref, b1_ref, w2_ref, b2_ref, o_ref, acc_ref):
    """One (TM x TH) reduction step of Linear -> GELU -> Linear.

    x_ref:  (TM, D_pad)  bf16     w1_ref: (D_pad, TH) bf16   b1_ref: (1, TH)  f32
    w2_ref: (TH, D_pad)  bf16     b2_ref: (1, D_pad)  f32
    o_ref:  (TM, D_pad)  f32 (written on last H step)
    acc_ref:(TM, D_pad)  f32 scratch, persists across the H (reduction) axis
    """
    j = pl.program_id(1)

    @pl.when(j == 0)
    def _init():
        # Fold b2 into the accumulator init (no separate epilogue add).
        acc_ref[...] = jnp.broadcast_to(b2_ref[...], acc_ref.shape)

    # bf16 MXU operands, f32 accumulation.
    h = jnp.dot(x_ref[...], w1_ref[...], preferred_element_type=jnp.float32)
    h = _gelu_tanh(h + b1_ref[...])                      # GELU kept in f32
    acc_ref[...] += jnp.dot(h.astype(w2_ref.dtype), w2_ref[...],
                            preferred_element_type=jnp.float32)

    @pl.when(j == pl.num_programs(1) - 1)
    def _finalize():
        o_ref[...] = acc_ref[...].astype(o_ref.dtype)


def _vmem_budget_bytes():
    cap = 64 * 1024 * 1024            # conservative fallback (v7x per-TC VMEM)
    try:
        cap = int(pltpu.get_tpu_info().vmem_capacity_bytes)
    except Exception:
        pass
    # ~75% of physical: leaves headroom for Mosaic internal scratch and the
    # materialized (TM, TH) GELU intermediate.
    return (cap * 3) // 4


def _tile_footprint_bytes(tm, th, d_pad, in_bytes, out_bytes):
    buf = 2  # default double buffering on every pipelined BlockSpec
    x_t = buf * tm * d_pad * in_bytes
    w1 = buf * d_pad * th * in_bytes
    w2 = buf * th * d_pad * in_bytes
    b1 = buf * th * 4
    b2 = buf * d_pad * 4
    o_t = buf * tm * d_pad * out_bytes
    acc = tm * d_pad * 4
    h_tmp = tm * th * (4 + in_bytes)   # f32 GELU intermediate + bf16 recast
    return x_t + w1 + w2 + b1 + b2 + o_t + acc + h_tmp


def _choose_tiles(m, d_pad, h_pad, budget, in_bytes, out_bytes):
    m8 = _round_up(max(m, 1), 8)
    # Keep >= 2 M tiles when there is enough work so the "parallel" axis can
    # feed both TensorCores on v7x (one extra cheap step on v5e/v6e).
    tm_cap = m8 if m8 <= 8 else max(8, _round_up(_cdiv(m8, 2), 8))
    tm_cands = [t for t in (1024, 512, 256, 128, 64, 32, 16, 8) if t <= tm_cap]
    if not tm_cands:
        tm_cands = [tm_cap]
    th_cands = []
    for t in (h_pad, 4096, 2048, 1024, 512, 256, 128):  # prefer full-H residency
        if t <= h_pad and t not in th_cands:
            th_cands.append(t)
    for tm in tm_cands:
        for th in th_cands:
            if _tile_footprint_bytes(tm, th, d_pad, in_bytes, out_bytes) <= budget:
                return tm, th
    return 8, 128


def feed_forward(x, w1, b1, w2, b2):
    """x: (batch, seq, D). w1: (D, H), b1: (H,), w2: (H, D), b2: (D,). Returns f32."""
    B, S, D = x.shape
    H = w1.shape[1]
    M = B * S

    out_dtype = x.dtype
    mxu_dtype = jnp.bfloat16
    in_bytes = jnp.dtype(mxu_dtype).itemsize
    out_bytes = jnp.dtype(out_dtype).itemsize

    D_pad = _round_up(D, 128)
    H_pad0 = _round_up(H, 128)

    budget = _vmem_budget_bytes()
    TM, TH = _choose_tiles(M, D_pad, H_pad0, budget, in_bytes, out_bytes)
    M_pad = _round_up(M, TM)
    H_pad = _round_up(H_pad0, TH)

    # Pre-cast MXU operands to bf16 (halves weight/activation HBM traffic).
    x2 = x.reshape(M, D).astype(mxu_dtype)
    if (M_pad, D_pad) != (M, D):       # pad only when actually needed
        x2 = jnp.pad(x2, ((0, M_pad - M), (0, D_pad - D)))
    w1p = w1.astype(mxu_dtype)
    w2p = w2.astype(mxu_dtype)
    if (D_pad, H_pad) != (D, H):
        w1p = jnp.pad(w1p, ((0, D_pad - D), (0, H_pad - H)))
        w2p = jnp.pad(w2p, ((0, H_pad - H), (0, D_pad - D)))
    b1p = b1.astype(jnp.float32)
    if H_pad != H:
        b1p = jnp.pad(b1p, ((0, H_pad - H),))
    b1p = b1p.reshape(1, H_pad)
    b2p = b2.astype(jnp.float32)
    if D_pad != D:
        b2p = jnp.pad(b2p, ((0, D_pad - D),))
    b2p = b2p.reshape(1, D_pad)

    grid_m = M_pad // TM
    grid_h = H_pad // TH
    grid = (grid_m, grid_h)

    # Truthful bytes estimate: W1/W2 are re-streamed once per M tile whenever
    # the H axis is split across grid steps (index_map depends on j).
    w_restream = 1 if grid_h == 1 else grid_m
    cost = pl.CostEstimate(
        flops=4 * M_pad * H_pad * D_pad,      # two matmuls, 2*M*H*D each
        transcendentals=M_pad * H_pad,        # tanh in GELU
        bytes_accessed=(M_pad * D_pad * in_bytes
                        + w_restream * 2 * D_pad * H_pad * in_bytes
                        + 4 * (H_pad + D_pad)
                        + M_pad * D_pad * out_bytes),
    )

    out = pl.pallas_call(
        _ffn_kernel,
        out_shape=jax.ShapeDtypeStruct((M_pad, D_pad), out_dtype),
        grid_spec=pltpu.PrefetchScalarGridSpec(
            num_scalar_prefetch=0,
            grid=grid,
            in_specs=[
                pl.BlockSpec((TM, D_pad), lambda i, j: (i, 0)),   # x tile
                pl.BlockSpec((D_pad, TH), lambda i, j: (0, j)),   # W1 chunk
                pl.BlockSpec((1, TH),     lambda i, j: (0, j)),   # b1 chunk
                pl.BlockSpec((TH, D_pad), lambda i, j: (j, 0)),   # W2 chunk
                pl.BlockSpec((1, D_pad),  lambda i, j: (0, 0)),   # b2 (resident)
            ],
            out_specs=pl.BlockSpec((TM, D_pad), lambda i, j: (i, 0)),
            scratch_shapes=[pltpu.VMEM((TM, D_pad), jnp.float32)],
        ),
        compiler_params=pltpu.CompilerParams(
            dimension_semantics=("parallel", "arbitrary"),
            vmem_limit_bytes=budget,
        ),
        cost_estimate=cost,
    )(x2, w1p, b1p, w2p, b2p)

    if (M_pad, D_pad) != (M, D):
        out = out[:M, :D]
    return out.reshape(B, S, D)


if __name__ == "__main__":
    # Config: emb_dim=32 -> hidden=4*32=128 (FeedForward(cfg) with cfg['emb_dim']=32)
    emb_dim = 32
    hidden = 4 * emb_dim
    batch, seq = 2, 8

    key = jax.random.PRNGKey(0)
    kx, kw1, kb1, kw2, kb2 = jax.random.split(key, 5)

    x = jax.random.normal(kx, (batch, seq, emb_dim), dtype=jnp.float32)
    lim1 = 1.0 / math.sqrt(emb_dim)
    lim2 = 1.0 / math.sqrt(hidden)
    w1 = jax.random.uniform(kw1, (emb_dim, hidden), jnp.float32, -lim1, lim1)
    b1 = jax.random.uniform(kb1, (hidden,), jnp.float32, -lim1, lim1)
    w2 = jax.random.uniform(kw2, (hidden, emb_dim), jnp.float32, -lim2, lim2)
    b2 = jax.random.uniform(kb2, (emb_dim,), jnp.float32, -lim2, lim2)

    out = jax.block_until_ready(feed_forward(x, w1, b1, w2, b2))
    assert out.shape == x.shape

    # Reference with matched MXU precision (bf16 operands, f32 accumulation/GELU).
    xm = x.reshape(-1, emb_dim)
    h_bf = jnp.dot(xm.astype(jnp.bfloat16), w1.astype(jnp.bfloat16),
                   preferred_element_type=jnp.float32) + b1
    h_bf = _gelu_tanh(h_bf)
    ref_bf = (jnp.dot(h_bf.astype(jnp.bfloat16), w2.astype(jnp.bfloat16),
                      preferred_element_type=jnp.float32) + b2).reshape(x.shape)
    assert jnp.allclose(out, ref_bf, atol=1e-3, rtol=1e-3), \
        float(jnp.max(jnp.abs(out - ref_bf)))

    # Full-f32 module reference (difference is bf16 MXU rounding only).
    h32 = _gelu_tanh(xm.astype(jnp.float32) @ w1 + b1)
    ref32 = (h32 @ w2 + b2).reshape(x.shape)
    assert jnp.allclose(out, ref32, atol=3e-2, rtol=3e-2), \
        float(jnp.max(jnp.abs(out - ref32)))

    print("KERNEL_OK")
</pallas_src>

<mosaic_0001>
module attributes {stable_mosaic.version = 11 : i64} {
  func.func @_ffn_kernel(%arg0: i32, %arg1: i32, %arg2: memref<8x128xbf16, #tpu.memory_space<vmem>>, %arg3: memref<128x128xbf16, #tpu.memory_space<vmem>>, %arg4: memref<1x128xf32, #tpu.memory_space<vmem>>, %arg5: memref<128x128xbf16, #tpu.memory_space<vmem>>, %arg6: memref<1x128xf32, #tpu.memory_space<vmem>>, %arg7: memref<8x128xf32, #tpu.memory_space<vmem>>, %arg8: memref<8x128xf32, #tpu.memory_space<vmem>>) attributes {dimension_semantics = [#tpu.dimension_semantics<parallel>, #tpu.dimension_semantics<arbitrary>], iteration_bounds = array<i64: 2, 1>, scalar_prefetch = 0 : i64, scratch_operands = 1 : i64, tpu.core_type = #tpu.core_type<tc>, window_params = [{transform_indices = @transform_0, window_bounds = array<i64: 8, 128>}, {transform_indices = @transform_1, window_bounds = array<i64: 128, 128>}, {transform_indices = @transform_2, window_bounds = array<i64: 1, 128>}, {transform_indices = @transform_3, window_bounds = array<i64: 128, 128>}, {pipeline_mode = #tpu.pipeline_mode<synchronous>, transform_indices = @transform_4, window_bounds = array<i64: 1, 128>}, {transform_indices = @transform_5, window_bounds = array<i64: 8, 128>}]} {
    %c0_i32 = arith.constant 0 : i32
    %0 = arith.cmpi eq, %arg1, %c0_i32 : i32
    %1 = arith.extui %0 : i1 to i32
    %c0_i32_0 = arith.constant 0 : i32
    %2 = arith.cmpi ne, %1, %c0_i32_0 : i32
    scf.if %2 {
      %c0_19 = arith.constant 0 : index
      %c0_20 = arith.constant 0 : index
      %31 = vector.load %arg6[%c0_19, %c0_20] : memref<1x128xf32, #tpu.memory_space<vmem>>, vector<1x128xf32>
      %32 = vector.shape_cast %31 : vector<1x128xf32> to vector<1x128xf32>
      %33 = vector.broadcast %32 : vector<1x128xf32> to vector<8x128xf32>
      %c0_21 = arith.constant 0 : index
      %c0_22 = arith.constant 0 : index
      %34 = vector.load %arg8[%c0_21, %c0_22] : memref<8x128xf32, #tpu.memory_space<vmem>>, vector<8x128xf32>
      tpu.vector_store %arg8[%c0_21, %c0_22], %33 {strides = array<i32>} : memref<8x128xf32, #tpu.memory_space<vmem>>, vector<8x128xf32>,
    } else {
    }
    %c0 = arith.constant 0 : index
    %c0_1 = arith.constant 0 : index
    %3 = vector.load %arg2[%c0, %c0_1] : memref<8x128xbf16, #tpu.memory_space<vmem>>, vector<8x128xbf16>
    %c0_2 = arith.constant 0 : index
    %c0_3 = arith.constant 0 : index
    %4 = vector.load %arg3[%c0_2, %c0_3] : memref<128x128xbf16, #tpu.memory_space<vmem>>, vector<128x128xbf16>
    %cst = arith.constant dense<0.000000e+00> : vector<8x128xf32>
    %5 = tpu.matmul %3, %4, %cst {dimension_numbers = #tpu.dot_dimension_numbers<[1], [0], [0], [1], [0, 0, 1, 1], [], []>} : vector<8x128xbf16>, vector<128x128xbf16>, vector<8x128xf32> -> vector<8x128xf32>
    %c0_4 = arith.constant 0 : index
    %c0_5 = arith.constant 0 : index
    %6 = vector.load %arg4[%c0_4, %c0_5] : memref<1x128xf32, #tpu.memory_space<vmem>>, vector<1x128xf32>
    %7 = vector.broadcast %6 : vector<1x128xf32> to vector<8x128xf32>
    %8 = arith.addf %5, %7 : vector<8x128xf32>
    %cst_6 = arith.constant 5.000000e-01 : f32
    %9 = vector.broadcast %cst_6 : f32 to vector<8x128xf32>
    %10 = arith.mulf %9, %8 : vector<8x128xf32>
    %11 = arith.mulf %8, %8 : vector<8x128xf32>
    %12 = arith.mulf %11, %8 : vector<8x128xf32>
    %cst_7 = arith.constant 4.471500e-02 : f32
    %13 = vector.broadcast %cst_7 : f32 to vector<8x128xf32>
    %14 = arith.mulf %13, %12 : vector<8x128xf32>
    %15 = arith.addf %8, %14 : vector<8x128xf32>
    %cst_8 = arith.constant 0.797884583 : f32
    %16 = vector.broadcast %cst_8 : f32 to vector<8x128xf32>
    %17 = arith.mulf %16, %15 : vector<8x128xf32>
    %18 = math.tanh %17 : vector<8x128xf32>
    %cst_9 = arith.constant 1.000000e+00 : f32
    %19 = vector.broadcast %cst_9 : f32 to vector<8x128xf32>
    %20 = arith.addf %19, %18 : vector<8x128xf32>
    %21 = arith.mulf %10, %20 : vector<8x128xf32>
    %c0_10 = arith.constant 0 : index
    %c0_11 = arith.constant 0 : index
    %22 = vector.load %arg8[%c0_10, %c0_11] : memref<8x128xf32, #tpu.memory_space<vmem>>, vector<8x128xf32>
    %23 = arith.truncf %21 : vector<8x128xf32> to vector<8x128xbf16>
    %c0_12 = arith.constant 0 : index
    %c0_13 = arith.constant 0 : index
    %24 = vector.load %arg5[%c0_12, %c0_13] : memref<128x128xbf16, #tpu.memory_space<vmem>>, vector<128x128xbf16>
    %cst_14 = arith.constant dense<0.000000e+00> : vector<8x128xf32>
    %25 = tpu.matmul %23, %24, %cst_14 {dimension_numbers = #tpu.dot_dimension_numbers<[1], [0], [0], [1], [0, 0, 1, 1], [], []>} : vector<8x128xbf16>, vector<128x128xbf16>, vector<8x128xf32> -> vector<8x128xf32>
    %26 = arith.addf %22, %25 : vector<8x128xf32>
    %c0_15 = arith.constant 0 : index
    %c0_16 = arith.constant 0 : index
    %27 = vector.load %arg8[%c0_15, %c0_16] : memref<8x128xf32, #tpu.memory_space<vmem>>, vector<8x128xf32>
    tpu.vector_store %arg8[%c0_15, %c0_16], %26 {strides = array<i32>} : memref<8x128xf32, #tpu.memory_space<vmem>>, vector<8x128xf32>,
    %c0_i32_17 = arith.constant 0 : i32
    %28 = arith.cmpi eq, %arg1, %c0_i32_17 : i32
    %29 = arith.extui %28 : i1 to i32
    %c0_i32_18 = arith.constant 0 : i32
    %30 = arith.cmpi ne, %29, %c0_i32_18 : i32
    scf.if %30 {
      %c0_19 = arith.constant 0 : index
      %c0_20 = arith.constant 0 : index
      %31 = vector.load %arg8[%c0_19, %c0_20] : memref<8x128xf32, #tpu.memory_space<vmem>>, vector<8x128xf32>
      %c0_21 = arith.constant 0 : index
      %c0_22 = arith.constant 0 : index
      %32 = vector.load %arg7[%c0_21, %c0_22] : memref<8x128xf32, #tpu.memory_space<vmem>>, vector<8x128xf32>
      tpu.vector_store %arg7[%c0_21, %c0_22], %31 {strides = array<i32>} : memref<8x128xf32, #tpu.memory_space<vmem>>, vector<8x128xf32>,
    } else {
    }
    return
  }
  func.func @transform_0(%arg0: i32, %arg1: i32) -> (i32, i32) {
    %c0_i32 = arith.constant 0 : i32
    %c0_i32_0 = arith.constant 0 : i32
    return %arg0, %c0_i32 : i32, i32
  }
  func.func @transform_1(%arg0: i32, %arg1: i32) -> (i32, i32) {
    %c0_i32 = arith.constant 0 : i32
    %c0_i32_0 = arith.constant 0 : i32
    return %c0_i32, %arg1 : i32, i32
  }
  func.func @transform_2(%arg0: i32, %arg1: i32) -> (i32, i32) {
    %c0_i32 = arith.constant 0 : i32
    %c0_i32_0 = arith.constant 0 : i32
    return %c0_i32, %arg1 : i32, i32
  }
  func.func @transform_3(%arg0: i32, %arg1: i32) -> (i32, i32) {
    %c0_i32 = arith.constant 0 : i32
    %c0_i32_0 = arith.constant 0 : i32
    return %arg1, %c0_i32 : i32, i32
  }
  func.func @transform_4(%arg0: i32, %arg1: i32) -> (i32, i32) {
    %c0_i32 = arith.constant 0 : i32
    %c0_i32_0 = arith.constant 0 : i32
    %c0_i32_1 = arith.constant 0 : i32
    return %c0_i32, %c0_i32_0 : i32, i32
  }
  func.func @transform_5(%arg0: i32, %arg1: i32) -> (i32, i32) {
    %c0_i32 = arith.constant 0 : i32
    %c0_i32_0 = arith.constant 0 : i32
    return %arg0, %c0_i32 : i32, i32
  }
}

</mosaic_0001>

<llo_original>
// kernel: tpu_custom_call.1
$region0: #{tpu_custom_call.1}
  #allocation0 [shape = 'u32[]', space=smem, size = 0x4, offset = 0x4, fixed_abs, tag = 'smem constant byte address 0x4 - core index']
  #allocation1 [shape = 'u32[72,128]{1,0:T(1,128)}', space=vmem, size = 0x9000, scoped, tag = 'internal scratch']
  #allocation2 [shape = 'f32[8,128]{1,0:T(8,128)}', space=vmem, size = 0x1000, scoped, tag = 'scratch operand']
  %s0 = inlined_call_operand.hbm [shape: bf16[16,128], index: 0, kind: input, shape index: {}]
  %s1 = inlined_call_operand.hbm [shape: bf16[128,128], index: 1, kind: input, shape index: {}]
  %s2 = inlined_call_operand.vmem [shape: f32[1,128], index: 2, kind: input, shape index: {}]
  %s3 = inlined_call_operand.hbm [shape: bf16[128,128], index: 3, kind: input, shape index: {}]
  %s4 = inlined_call_operand.vmem [shape: f32[1,128], index: 4, kind: input, shape index: {}]
  %s5 = inlined_call_operand.hbm [shape: f32[16,128], index: 5, kind: output, shape index: {}]
  %s6 = sld [smem:[#allocation0]]
  $region73: #{tpu_custom_call.1} parent=0
    _
  %s8 = ssub.s32 1, %s6
  %s9 = scalar_select 0, %s8, %s6
  $region1: #{tpu_custom_call.1} parent=0
    #allocation3 [shape = 'u8[4096]{0}', space=vmem, size = 0x1000, scoped, tag = 'input window, operand 0']
    #allocation4 [shape = 's32[2]{0}', space=sflag, size = 0x8, scoped, tag = 'scoped memory for tpu_custom_call.1']
    #allocation5 [shape = 's32[2]{0}', space=sflag, size = 0x8, scoped, tag = 'scoped memory for tpu_custom_call.1']
    #allocation6 [shape = 'u8[32768]{0}', space=vmem, size = 0x8000, scoped, tag = 'input window, operand 1, single buffered']
    #allocation7 [shape = 's32[1]{0}', space=sflag, size = 0x4, scoped, tag = 'scoped memory for tpu_custom_call.1']
    #allocation8 [shape = 'u8[32768]{0}', space=vmem, size = 0x8000, scoped, tag = 'input window, operand 3, single buffered']
    #allocation9 [shape = 'u8[8192]{0}', space=vmem, size = 0x2000, scoped, tag = 'output window, operand 0']
    %10 = vsyncpa [#allocation4], 0
    %s11 = scalar_lea.sflag [#allocation4], 1
    %12 = vsyncpa %s11, 0
    %13 = vsyncpa [#allocation7], 0
    %14 = vsyncpa [#allocation5], 0
    %s15 = scalar_lea.sflag [#allocation5], 1
    %16 = vsyncpa %s15, 0
    loop: start=0, step=1, limit=4
    $region2: #{tpu_custom_call.1} parent=1 // loop_pre_header
      _
    $region3: #{tpu_custom_call.1} parent=1 // loop_header
      %s18 = sphi 0, %s22
      %p19 = scmp.ge.s32.totalorder %s18, 4
      %s25 = sphi 0, %s37
      %s26 = sphi 0, %s33
      %s27 = sphi 0, %s25
      %s28 = sphi 0, %s26
      %s29 = sphi 0, %s27
      %s30 = sphi 0, %s28
      %s40 = sphi 0, %s42
      %s43 = sphi 0, %s40
      %s44 = sphi 0, %s43
      %s60 = sphi 0, %s44
      %s66 = sphi 0, %s68
      %s69 = sphi 0, %s66
      %s70 = sphi 0, %s69
      %s86 = sphi 0, %s70
      %s92 = sphi 0, %s94
      %s95 = sphi 0, %s92
      %s96 = sphi 0, %s95
      %s112 = sphi 0, %s96
      %s118 = sphi 0, %s120
      %s121 = sphi 0, %s118
      %s122 = sphi 0, %s121
      %s138 = sphi 0, %s122
      %s142 = sphi 0, %s142
      %s144 = sphi 0, %s142
      %s145 = sphi 0, %s144
      %s159 = sphi 0, %s145
      %s165 = sphi 0, %s167
      %s168 = sphi 0, %s165
      %s169 = sphi 0, %s168
      %s185 = sphi 0, %s169
    $region4: #{tpu_custom_call.1} parent=1 // loop_header_branch
      %21 = sbr.rel (%p19) target = $region8
    $region5: #{tpu_custom_call.1} parent=1 // loop_body
      %s23 = ssub.s32 %s18, 1
      %s24 = ssub.s32 %s18, 2
      %s31 = sadd.s32 1, %s26
      %p32 = scmp.ge.s32.totalorder %s31, 1
      %s33 = scalar_select %p32, 0, %s31
      %s34 = sadd.s32 1, %s25
      %s35 = scalar_select %p32, %s34, %s25
      %p36 = scmp.ge.s32.totalorder %s35, 2
      %s37 = scalar_select %p36, 0, %s35
      %s38 = ssub.s32 %s25, %s37
      %p39 = scmp.eq.s32.totalorder %s38, 0
      %s41 = sadd.s32 %s40, 1
      %s42 = scalar_select %p39, %s40, %s41
      %p45 = pneg %p39
      %p46 = scmp.eq.s32.totalorder %s18, 1
      %p47 = por %p45, %p46
      %p48 = scmp.ne.s32.totalorder %s40, %s43
      %p49 = scmp.eq.s32.totalorder %s18, 0
      %p50 = por %p48, %p49
      %p51 = scmp.ne.s32.totalorder %s40, %s43
      %p52 = scmp.eq.s32.totalorder %s23, 1
      %p53 = por %p51, %p52
      %p54 = scmp.ne.s32.totalorder %s43, %s44
      %p55 = scmp.eq.s32.totalorder %s23, 0
      %p56 = por %p54, %p55
      %p57 = scmp.ne.s32.totalorder %s43, %s44
      %p58 = scmp.eq.s32.totalorder %s24, 1
      %p59 = por %p57, %p58
      %p61 = scmp.ne.s32.totalorder %s44, %s60
      %p62 = scmp.eq.s32.totalorder %s24, 0
      %p63 = por %p61, %p62
      %s64 = ssub.s32 %s26, %s33
      %p65 = scmp.eq.s32.totalorder %s64, 0
      %s67 = sadd.s32 %s66, 1
      %s68 = scalar_select %p65, %s66, %s67
      %p71 = pneg %p65
      %p72 = scmp.eq.s32.totalorder %s18, 1
      %p73 = por %p71, %p72
      %p74 = scmp.ne.s32.totalorder %s66, %s69
      %p75 = scmp.eq.s32.totalorder %s18, 0
      %p76 = por %p74, %p75
      %p77 = scmp.ne.s32.totalorder %s66, %s69
      %p78 = scmp.eq.s32.totalorder %s23, 1
      %p79 = por %p77, %p78
      %p80 = scmp.ne.s32.totalorder %s69, %s70
      %p81 = scmp.eq.s32.totalorder %s23, 0
      %p82 = por %p80, %p81
      %p83 = scmp.ne.s32.totalorder %s69, %s70
      %p84 = scmp.eq.s32.totalorder %s24, 1
      %p85 = por %p83, %p84
      %p87 = scmp.ne.s32.totalorder %s70, %s86
      %p88 = scmp.eq.s32.totalorder %s24, 0
      %p89 = por %p87, %p88
      %s90 = ssub.s32 %s26, %s33
      %p91 = scmp.eq.s32.totalorder %s90, 0
      %s93 = sadd.s32 %s92, 1
      %s94 = scalar_select %p91, %s92, %s93
      %p97 = pneg %p91
      %p98 = scmp.eq.s32.totalorder %s18, 1
      %p99 = por %p97, %p98
      %p100 = scmp.ne.s32.totalorder %s92, %s95
      %p101 = scmp.eq.s32.totalorder %s18, 0
      %p102 = por %p100, %p101
      %p103 = scmp.ne.s32.totalorder %s92, %s95
      %p104 = scmp.eq.s32.totalorder %s23, 1
      %p105 = por %p103, %p104
      %p106 = scmp.ne.s32.totalorder %s95, %s96
      %p107 = scmp.eq.s32.totalorder %s23, 0
      %p108 = por %p106, %p107
      %p109 = scmp.ne.s32.totalorder %s95, %s96
      %p110 = scmp.eq.s32.totalorder %s24, 1
      %p111 = por %p109, %p110
      %p113 = scmp.ne.s32.totalorder %s96, %s112
      %p114 = scmp.eq.s32.totalorder %s24, 0
      %p115 = por %p113, %p114
      %s116 = ssub.s32 %s26, %s33
      %p117 = scmp.eq.s32.totalorder %s116, 0
      %s119 = sadd.s32 %s118, 1
      %s120 = scalar_select %p117, %s118, %s119
      %p123 = pneg %p117
      %p124 = scmp.eq.s32.totalorder %s18, 1
      %p125 = por %p123, %p124
      %p126 = scmp.ne.s32.totalorder %s118, %s121
      %p127 = scmp.eq.s32.totalorder %s18, 0
      %p128 = por %p126, %p127
      %p129 = scmp.ne.s32.totalorder %s118, %s121
      %p130 = scmp.eq.s32.totalorder %s23, 1
      %p131 = por %p129, %p130
      %p132 = scmp.ne.s32.totalorder %s121, %s122
      %p133 = scmp.eq.s32.totalorder %s23, 0
      %p134 = por %p132, %p133
      %p135 = scmp.ne.s32.totalorder %s121, %s122
      %p136 = scmp.eq.s32.totalorder %s24, 1
      %p137 = por %p135, %p136
      %p139 = scmp.ne.s32.totalorder %s122, %s138
      %p140 = scmp.eq.s32.totalorder %s24, 0
      %p141 = por %p139, %p140
      %s143 = sadd.s32 %s142, 1
      %p146 = scmp.eq.s32.totalorder %s18, 1
      %p147 = scmp.ne.s32.totalorder %s142, %s144
      %p148 = scmp.eq.s32.totalorder %s18, 0
      %p149 = por %p147, %p148
      %p150 = scmp.ne.s32.totalorder %s142, %s144
      %p151 = scmp.eq.s32.totalorder %s23, 1
      %p152 = por %p150, %p151
      %p153 = scmp.ne.s32.totalorder %s144, %s145
      %p154 = scmp.eq.s32.totalorder %s23, 0
      %p155 = por %p153, %p154
      %p156 = scmp.ne.s32.totalorder %s144, %s145
      %p157 = scmp.eq.s32.totalorder %s24, 1
      %p158 = por %p156, %p157
      %p160 = scmp.ne.s32.totalorder %s145, %s159
      %p161 = scmp.eq.s32.totalorder %s24, 0
      %p162 = por %p160, %p161
      %s163 = ssub.s32 %s25, %s37
      %p164 = scmp.eq.s32.totalorder %s163, 0
      %s166 = sadd.s32 %s165, 1
      %s167 = scalar_select %p164, %s165, %s166
      %p170 = pneg %p164
      %p171 = scmp.eq.s32.totalorder %s18, 1
      %p172 = por %p170, %p171
      %p173 = scmp.ne.s32.totalorder %s165, %s168
      %p174 = scmp.eq.s32.totalorder %s18, 0
      %p175 = por %p173, %p174
      %p176 = scmp.ne.s32.totalorder %s165, %s168
      %p177 = scmp.eq.s32.totalorder %s23, 1
      %p178 = por %p176, %p177
      %p179 = scmp.ne.s32.totalorder %s168, %s169
      %p180 = scmp.eq.s32.totalorder %s23, 0
      %p181 = por %p179, %p180
      %p182 = scmp.ne.s32.totalorder %s168, %s169
      %p183 = scmp.eq.s32.totalorder %s24, 1
      %p184 = por %p182, %p183
      %p186 = scmp.ne.s32.totalorder %s169, %s185
      %p187 = scmp.eq.s32.totalorder %s24, 0
      %p188 = por %p186, %p187
      %p189 = scmp.le.s32.totalorder 1, %s18
      %p190 = scmp.lt.s32.totalorder %s18, 3
      %p191 = pnand %p189, %p190
      %p192 = pneg %p191
      // Predicated region
      $region9: #{tpu_custom_call.1} parent=5 // pred_check
        _
      $region10: #{tpu_custom_call.1} parent=5 // pred_check_branch
        %194 = sbr.rel (%p191) target = $region12
      $region11: #{tpu_custom_call.1} parent=5 // pred_region
        %s195 = ssub.s32 %s18, 1
        // Predicated region
        $region13: #{tpu_custom_call.1} parent=11 // pred_check
          %p196 = pneg %p82
        $region14: #{tpu_custom_call.1} parent=11 // pred_check_branch
          %198 = sbr.rel (%p196) target = $region16
        $region15: #{tpu_custom_call.1} parent=11 // pred_region
          %200 = vsyncadd [#allocation7], 0
          %s201 = smul.addr %s28, 4
          %s202 = scalar_lea.hbm %s1, %s201
          %s203 = sshll.u32 %s202, 4
          %s204 = int_to_ptr.hbm [resolvable:$true] %s203
          %s205 = sshll.u32 [#allocation6], 4
          %s206 = int_to_ptr.vmem [resolvable:$true] %s205
          %211 = dma.hbm_to_vmem [thread:$0]  %s204, 1024, %s206, [#allocation7], 64, 64, 4
        $region16: #{tpu_custom_call.1} parent=11 // pred_fallthru
          _
        // Predicated region
        $region17: #{tpu_custom_call.1} parent=11 // pred_check
          %p212 = pneg %p108
        $region18: #{tpu_custom_call.1} parent=11 // pred_check_branch
          %214 = sbr.rel (%p212) target = $region20
        $region19: #{tpu_custom_call.1} parent=11 // pred_region
          %p215 = scmp.lt.s32.totalorder %s28, 0
          %s216 = scalar_select %p215, %s28, 0
          %s217 = scalar_lea.vmem %s2, %s216
        $region20: #{tpu_custom_call.1} parent=11 // pred_fallthru
          _
        // Predicated region
        $region21: #{tpu_custom_call.1} parent=11 // pred_check
          %p218 = pneg %p134
        $region22: #{tpu_custom_call.1} parent=11 // pred_check_branch
          %220 = sbr.rel (%p218) target = $region24
        $region23: #{tpu_custom_call.1} parent=11 // pred_region
          %s221 = smul.u32 16, %s28
          %223 = vsyncadd [#allocation7], 0
          %s224 = smul.addr %s221, 4
          %s225 = scalar_lea.hbm %s3, %s224
          %s226 = sshll.u32 %s225, 4
          %s227 = int_to_ptr.hbm [resolvable:$true] %s226
          %s228 = sshll.u32 [#allocation8], 4
          %s229 = int_to_ptr.vmem [resolvable:$true] %s228
          %234 = dma.hbm_to_vmem [thread:$0]  %s227, 1024, %s229, [#allocation7], 64, 64, 4
        $region24: #{tpu_custom_call.1} parent=11 // pred_fallthru
          _
        // Predicated region
        $region25: #{tpu_custom_call.1} parent=11 // pred_check
          %p235 = pneg %p155
        $region26: #{tpu_custom_call.1} parent=11 // pred_check_branch
          %237 = sbr.rel (%p235) target = $region28
        $region27: #{tpu_custom_call.1} parent=11 // pred_region
          _
        $region28: #{tpu_custom_call.1} parent=11 // pred_fallthru
          _
      $region12: #{tpu_custom_call.1} parent=5 // pred_fallthru
        _
      %p238 = scmp.lt.s32.totalorder %s18, 2
      // Predicated region
      $region29: #{tpu_custom_call.1} parent=5 // pred_check
        %p239 = pneg %p238
      $region30: #{tpu_custom_call.1} parent=5 // pred_check_branch
        %241 = sbr.rel (%p239) target = $region32
      $region31: #{tpu_custom_call.1} parent=5 // pred_region
        // Predicated region
        $region33: #{tpu_custom_call.1} parent=31 // pred_check
          %p242 = pneg %p50
        $region34: #{tpu_custom_call.1} parent=31 // pred_check_branch
          %244 = sbr.rel (%p242) target = $region36
        $region35: #{tpu_custom_call.1} parent=31 // pred_region
          %s245 = sand.u32 %s40, 1
          %s246 = scalar_lea.sflag [#allocation4], %s245
          %s247 = sand.u32 %s40, 1
          %s248 = smul.addr %s247, 4
          %s249 = scalar_lea.vmem [#allocation3], %s248
          %251 = vsyncadd %s246, 0
          %s252 = smul.addr %s25, 4
          %s253 = scalar_lea.hbm %s0, %s252
          %s255 = sshll.u32 %s253, 4
          %s256 = int_to_ptr.hbm [resolvable:$true] %s255
          %s257 = sshll.u32 %s249, 4
          %s258 = int_to_ptr.vmem [resolvable:$true] %s257
          %260 = dma.hbm_to_vmem [thread:$0]  %s256, 64, %s258, %s246
        $region36: #{tpu_custom_call.1} parent=31 // pred_fallthru
          _
      $region32: #{tpu_custom_call.1} parent=5 // pred_fallthru
        _
      %p261 = scmp.le.s32.totalorder 1, %s18
      %p262 = scmp.lt.s32.totalorder %s18, 3
      %p263 = pnand %p261, %p262
      %p264 = pneg %p263
      // Predicated region
      $region37: #{tpu_custom_call.1} parent=5 // pred_check
        _
      $region38: #{tpu_custom_call.1} parent=5 // pred_check_branch
        %266 = sbr.rel (%p263) target = $region40
      $region39: #{tpu_custom_call.1} parent=5 // pred_region
        %s267 = ssub.s32 %s18, 1
        %s268 = sand.u32 %s43, 1
        %s269 = scalar_lea.sflag [#allocation4], %s268
        %s270 = sand.u32 %s43, 1
        %s271 = smul.addr %s270, 4
        %s272 = scalar_lea.vmem [#allocation3], %s271
        // Predicated region
        $region41: #{tpu_custom_call.1} parent=39 // pred_check
          %p273 = pneg %p56
        $region42: #{tpu_custom_call.1} parent=39 // pred_check_branch
          %275 = sbr.rel (%p273) target = $region44
        $region43: #{tpu_custom_call.1} parent=39 // pred_region
          %277 = dma.done %s269, 64
        $region44: #{tpu_custom_call.1} parent=39 // pred_fallthru
          _
        // Predicated region
        $region45: #{tpu_custom_call.1} parent=39 // pred_check
          %p278 = pneg %p82
        $region46: #{tpu_custom_call.1} parent=39 // pred_check_branch
          %280 = sbr.rel (%p278) target = $region48
        $region47: #{tpu_custom_call.1} parent=39 // pred_region
          %282 = dma.done [#allocation7], 1024
        $region48: #{tpu_custom_call.1} parent=39 // pred_fallthru
          _
        // Predicated region
        $region49: #{tpu_custom_call.1} parent=39 // pred_check
          %p283 = pneg %p134
        $region50: #{tpu_custom_call.1} parent=39 // pred_check_branch
          %285 = sbr.rel (%p283) target = $region52
        $region51: #{tpu_custom_call.1} parent=39 // pred_region
          %287 = dma.done [#allocation7], 1024
        $region52: #{tpu_custom_call.1} parent=39 // pred_fallthru
          _
        %s288 = sand.u32 %s43, 1
        %s289 = scalar_lea.sflag [#allocation4], %s288
        %s290 = sand.u32 %s43, 1
        %s291 = smul.addr %s290, 4
        %s292 = scalar_lea.vmem [#allocation3], %s291
        %p293 = pneg %p56
        %p294 = pneg %p53
        %p295 = pneg %p82
        %p296 = pneg %p79
        %p297 = scmp.lt.s32.totalorder %s28, 0
        %s298 = scalar_select %p297, %s28, 0
        %s299 = scalar_lea.vmem %s2, %s298
        %p300 = pneg %p108
        %p301 = pneg %p105
        %p302 = pneg %p134
        %p303 = pneg %p131
        %p304 = pneg %p155
        %p305 = pneg %p152
        %p306 = pneg %p181
        %p307 = pneg %p178
        %s308 = sand.u32 %s168, 1
        %s309 = scalar_lea.sflag [#allocation5], %s308
        %s310 = sand.u32 %s168, 1
        %s311 = smul.addr %s310, 8
        %s312 = scalar_lea.vmem [#allocation9], %s311
        %p313 = scmp.lt.s32.totalorder %s28, 0
        %s314 = scalar_select %p313, %s28, 0
        %s315 = scalar_lea.vmem %s2, %s314
        %s316 = smul.u32 16, %s28
        %p317 = scmp.eq.s32.totalorder %s28, 0
        // Predicated region
        $region53: #{tpu_custom_call.1} parent=39 // pred_check
          %p318 = pneg %p317
        $region54: #{tpu_custom_call.1} parent=39 // pred_check_branch
          %320 = sbr.rel (%p318) target = $region56
        $region55: #{tpu_custom_call.1} parent=39 // pred_region
          %v321 = vld [vmem:[%s4] sm:$0x1]
          %v323 = vperm.slane %v321, 0
          %325 = vst [vmem:[#allocation2] sm:$0xff] %v323
        $region56: #{tpu_custom_call.1} parent=39 // pred_fallthru
          _
        %v326 = vld [vmem:[%s272] sm:$0xf]
        %v327 = vld [vmem:[#allocation6] sm:$0xf]
        %v328 = vld [vmem:[#allocation6 + $0x4] sm:$0xf]
        %v329 = vld [vmem:[#allocation6 + $0x8] sm:$0xf]
        %v330 = vld [vmem:[#allocation6 + $0xc] sm:$0xf]
        %v331 = vld [vmem:[#allocation6 + $0x10] sm:$0xf]
        %v332 = vld [vmem:[#allocation6 + $0x14] sm:$0xf]
        %v333 = vld [vmem:[#allocation6 + $0x18] sm:$0xf]
        %v334 = vld [vmem:[#allocation6 + $0x1c] sm:$0xf]
        %v335 = vld [vmem:[#allocation6 + $0x20] sm:$0xf]
        %v336 = vld [vmem:[#allocation6 + $0x24] sm:$0xf]
        %v337 = vld [vmem:[#allocation6 + $0x28] sm:$0xf]
        %v338 = vld [vmem:[#allocation6 + $0x2c] sm:$0xf]
        %v339 = vld [vmem:[#allocation6 + $0x30] sm:$0xf]
        %v340 = vld [vmem:[#allocation6 + $0x34] sm:$0xf]
        %v341 = vld [vmem:[#allocation6 + $0x38] sm:$0xf]
        %v342 = vld [vmem:[#allocation6 + $0x3c] sm:$0xf]
        %v343 = vld [vmem:[%s315] sm:$0x1]
        %v345 = vperm.slane %v343, 0
        %v363 = vunpack.c.l.b16 %v327
        %v364 = vunpack.c.l.b16 %v328
        %v365 = vunpack.c.l.b16 %v329
        %v366 = vunpack.c.l.b16 %v330
        %v367 = vunpack.c.l.b16 %v331
        %v368 = vunpack.c.l.b16 %v332
        %v369 = vunpack.c.l.b16 %v333
        %v370 = vunpack.c.l.b16 %v334
        %v371 = vunpack.c.l.b16 %v335
        %v372 = vunpack.c.l.b16 %v336
        %v373 = vunpack.c.l.b16 %v337
        %v374 = vunpack.c.l.b16 %v338
        %v375 = vunpack.c.l.b16 %v339
        %v376 = vunpack.c.l.b16 %v340
        %v377 = vunpack.c.l.b16 %v341
        %v378 = vunpack.c.l.b16 %v342
        %v379 = vpack.c.b16 %v364, %v363
        %v380 = vpack.c.b16 %v366, %v365
        %v381 = vpack.c.b16 %v368, %v367
        %v382 = vpack.c.b16 %v370, %v369
        %v383 = vpack.c.b16 %v372, %v371
        %v384 = vpack.c.b16 %v374, %v373
        %v385 = vpack.c.b16 %v376, %v375
        %v386 = vpack.c.b16 %v378, %v377
        %395 = vmatpush.bf16.msra.mxu0 %v386
        %396 = vmatpush.bf16.msra.mxu0 %v385
        %397 = vmatpush.bf16.msra.mxu0 %v384
        %398 = vmatpush.bf16.msra.mxu0 %v383
        %399 = vmatpush.bf16.msra.mxu0 %v382
        %400 = vmatpush.bf16.msra.mxu0 %v381
        %401 = vmatpush.bf16.msra.mxu0 %v380
        %402 = vmatpush.bf16.msra.mxu0 %v379
        %403 = vmatmul.bf16.gmra.mxu0 %v326
        %v404 = vpop.f32.mrf.mxu0
        %v405 = vadd.f32 %v345, %v404
        %v406 = vpop.f32.mrf.mxu0
        %407 = vdwg.mxu0
        %v408 = vmul.f32 %v405, 0.5
        %v409 = vmul.f32 %v405, %v405
        %v410 = vmul.f32 %v409, %v405
        %v411 = vmul.f32 %v410, 0.044715
        %v412 = vadd.f32 %v405, %v411
        %v413 = vmul.f32 %v412, 0.7978846
        %v414 = vtanh.pop %v413
        %v415 = vadd.f32 %v414, 1.0
        %v416 = vmul.f32 %v408, %v415
        %v417 = vld [vmem:[#allocation2] sm:$0xff]
        %v418 = vpack.c.bf16 %v416, %v416
        %v419 = vld [vmem:[#allocation8] sm:$0xf]
        %v420 = vld [vmem:[#allocation8 + $0x4] sm:$0xf]
        %v421 = vld [vmem:[#allocation8 + $0x8] sm:$0xf]
        %v422 = vld [vmem:[#allocation8 + $0xc] sm:$0xf]
        %v423 = vld [vmem:[#allocation8 + $0x10] sm:$0xf]
        %v424 = vld [vmem:[#allocation8 + $0x14] sm:$0xf]
        %v425 = vld [vmem:[#allocation8 + $0x18] sm:$0xf]
        %v426 = vld [vmem:[#allocation8 + $0x1c] sm:$0xf]
        %v427 = vld [vmem:[#allocation8 + $0x20] sm:$0xf]
        %v428 = vld [vmem:[#allocation8 + $0x24] sm:$0xf]
        %v429 = vld [vmem:[#allocation8 + $0x28] sm:$0xf]
        %v430 = vld [vmem:[#allocation8 + $0x2c] sm:$0xf]
        %v431 = vld [vmem:[#allocation8 + $0x30] sm:$0xf]
        %v432 = vld [vmem:[#allocation8 + $0x34] sm:$0xf]
        %v433 = vld [vmem:[#allocation8 + $0x38] sm:$0xf]
        %v434 = vld [vmem:[#allocation8 + $0x3c] sm:$0xf]
        %v451 = vunpack.c.l.b16 %v419
        %v452 = vunpack.c.l.b16 %v420
        %v453 = vunpack.c.l.b16 %v421
        %v454 = vunpack.c.l.b16 %v422
        %v455 = vunpack.c.l.b16 %v423
        %v456 = vunpack.c.l.b16 %v424
        %v457 = vunpack.c.l.b16 %v425
        %v458 = vunpack.c.l.b16 %v426
        %v459 = vunpack.c.l.b16 %v427
        %v460 = vunpack.c.l.b16 %v428
        %v461 = vunpack.c.l.b16 %v429
        %v462 = vunpack.c.l.b16 %v430
        %v463 = vunpack.c.l.b16 %v431
        %v464 = vunpack.c.l.b16 %v432
        %v465 = vunpack.c.l.b16 %v433
        %v466 = vunpack.c.l.b16 %v434
        %v467 = vpack.c.b16 %v452, %v451
        %v468 = vpack.c.b16 %v454, %v453
        %v469 = vpack.c.b16 %v456, %v455
        %v470 = vpack.c.b16 %v458, %v457
        %v471 = vpack.c.b16 %v460, %v459
        %v472 = vpack.c.b16 %v462, %v461
        %v473 = vpack.c.b16 %v464, %v463
        %v474 = vpack.c.b16 %v466, %v465
        %483 = vmatpush.bf16.msra.mxu0 %v474
        %484 = vmatpush.bf16.msra.mxu0 %v473
        %485 = vmatpush.bf16.msra.mxu0 %v472
        %486 = vmatpush.bf16.msra.mxu0 %v471
        %487 = vmatpush.bf16.msra.mxu0 %v470
        %488 = vmatpush.bf16.msra.mxu0 %v469
        %489 = vmatpush.bf16.msra.mxu0 %v468
        %490 = vmatpush.bf16.msra.mxu0 %v467
        %491 = vmatmul.bf16.gmra.mxu0 %v418
        %v492 = vpop.f32.mrf.mxu0
        %v493 = vadd.f32 0.0, %v492
        %v494 = vpop.f32.mrf.mxu0
        %495 = vdwg.mxu0
        %v496 = vadd.f32 %v417, %v493
        %497 = vst [vmem:[#allocation2] sm:$0xff] %v496
        // Predicated region
        $region57: #{tpu_custom_call.1} parent=39 // pred_check
          %p498 = pneg %p317
        $region58: #{tpu_custom_call.1} parent=39 // pred_check_branch
          %500 = sbr.rel (%p498) target = $region60
        $region59: #{tpu_custom_call.1} parent=39 // pred_region
          %v501 = vld [vmem:[#allocation2] sm:$0xff]
          %502 = vst [vmem:[%s312] sm:$0xff] %v501
        $region60: #{tpu_custom_call.1} parent=39 // pred_fallthru
          _
        %s503 = sand.u32 %s168, 1
        %s504 = scalar_lea.sflag [#allocation5], %s503
        %s505 = sand.u32 %s168, 1
        %s506 = smul.addr %s505, 8
        %s507 = scalar_lea.vmem [#allocation9], %s506
        // Predicated region
        $region61: #{tpu_custom_call.1} parent=39 // pred_check
          %p508 = pneg %p178
        $region62: #{tpu_custom_call.1} parent=39 // pred_check_branch
          %510 = sbr.rel (%p508) target = $region64
        $region63: #{tpu_custom_call.1} parent=39 // pred_region
          %512 = vsyncadd %s504, 0
          %s513 = smul.addr %s27, 8
          %s514 = scalar_lea.hbm %s5, %s513
          %s516 = sshll.u32 %s507, 4
          %s517 = int_to_ptr.vmem [resolvable:$true] %s516
          %s518 = sshll.u32 %s514, 4
          %s519 = int_to_ptr.hbm [resolvable:$true] %s518
          %521 = dma.vmem_to_hbm [thread:$0]  %s517, 128, %s519, %s504
        $region64: #{tpu_custom_call.1} parent=39 // pred_fallthru
          _
      $region40: #{tpu_custom_call.1} parent=5 // pred_fallthru
        _
      %p522 = scmp.le.s32.totalorder 2, %s18
      // Predicated region
      $region65: #{tpu_custom_call.1} parent=5 // pred_check
        %p523 = pneg %p522
      $region66: #{tpu_custom_call.1} parent=5 // pred_check_branch
        %525 = sbr.rel (%p523) target = $region68
      $region67: #{tpu_custom_call.1} parent=5 // pred_region
        %s526 = ssub.s32 %s18, 2
        // Predicated region
        $region69: #{tpu_custom_call.1} parent=67 // pred_check
          %p527 = pneg %p184
        $region70: #{tpu_custom_call.1} parent=67 // pred_check_branch
          %529 = sbr.rel (%p527) target = $region72
        $region71: #{tpu_custom_call.1} parent=67 // pred_region
          %s530 = sand.u32 %s169, 1
          %s531 = scalar_lea.sflag [#allocation5], %s530
          %s532 = sand.u32 %s169, 1
          %s533 = smul.addr %s532, 8
          %s534 = scalar_lea.vmem [#allocation9], %s533
          %536 = dma.done %s531, 128
        $region72: #{tpu_custom_call.1} parent=67 // pred_fallthru
          _
      $region68: #{tpu_custom_call.1} parent=5 // pred_fallthru
        _
    $region6: #{tpu_custom_call.1} parent=1 // loop_footer
      %s22 = sadd.s32 1, %s18
    $region7: #{tpu_custom_call.1} parent=1 // loop_footer_branch
      %17 = sbr.rel target = $region3
    $region8: #{tpu_custom_call.1} parent=1 // loop_exit
      _
    %537 = vsyncpa [#allocation4], 1
    %s538 = scalar_lea.sflag [#allocation4], 1
    %539 = vsyncpa %s538, 1
    %540 = vsyncpa [#allocation7], 1
    %541 = vsyncpa [#allocation5], 1
    %s542 = scalar_lea.sflag [#allocation5], 1
    %543 = vsyncpa %s542, 1

</llo_original>
